<compile_context>
chip_gen: v6e
topology: v6e:2x2x1
jax: 0.10.0
libtpu: 0.0.40
codegen_flags: <defaults>
</compile_context>

<pallas_src>
import functools

import jax
import jax.numpy as jnp
import numpy as np
from jax import lax
from jax.experimental import pallas as pl
from jax.experimental.pallas import tpu as pltpu

_MIB = 1024 * 1024


def _loss_stats_kernel(gt_ref, pred_ref, out_ref, *,
                       maxdisp, t_valid, num_rows, tile_h, n_h, needs_mask):
    """Accumulate per-(batch, split) loss statistics over H-tiles.

    out_ref rows (each lane-wide, length W):
      [0] sum |d| * m     (L1 numerator)
      [1] sum d^2 * m     (L2 numerator)
      [2] sum m           (valid-pixel count for l1/l2)
      [3] sum |GT-pred| * m_io   (inputoutput numerator)
      [4] sum m_io               (inputoutput count)
    """
    h = pl.program_id(2)

    @pl.when(h == 0)
    def _init():
        out_ref[...] = jnp.zeros_like(out_ref)

    gt_raw = gt_ref[...]     # (tile_h, W)
    pr_raw = pred_ref[...]   # (tile_h, W)
    if gt_raw.dtype != jnp.float32:
        gt_raw = gt_raw.astype(jnp.float32)
    if pr_raw.dtype != jnp.float32:
        pr_raw = pr_raw.astype(jnp.float32)

    # Masks from the raw GT. Since 0 < t_valid < maxdisp,
    # (clamp(gt) > t_valid) == (gt > t_valid), so no clamp needed for masks.
    m = gt_raw > t_valid          # l1/l2 valid mask
    m_io = gt_raw < maxdisp       # inputoutput mask (unclamped GT)

    # 0-floor clamp on GT is redundant: gt <= t_valid pixels (incl. negatives)
    # are removed by `m`, and for gt > t_valid > 0, clip == minimum.
    diff = jnp.clip(pr_raw, 0.0, maxdisp) - jnp.minimum(gt_raw, maxdisp)
    dm = jnp.where(m, jnp.abs(diff), 0.0)                 # |d| * m (select, not mul)
    d_io = jnp.where(m_io, jnp.abs(gt_raw - pr_raw), 0.0)

    def accumulate(a_dm, a_cnt, a_dio, a_cnt_io):
        # Single lane-dense (5, W) RMW per tile; cross-lane W reduction is
        # deferred to the tiny plain-JAX epilogue in the wrapper.
        part = jnp.concatenate(
            [jnp.sum(a_dm, axis=0, keepdims=True),            # L1 numerator
             jnp.sum(a_dm * a_dm, axis=0, keepdims=True),     # L2 numerator
             jnp.sum(a_cnt, axis=0, keepdims=True),           # valid count
             jnp.sum(a_dio, axis=0, keepdims=True),           # io numerator
             jnp.sum(a_cnt_io, axis=0, keepdims=True)],       # io count
            axis=0)                                           # (5, W)
        out_ref[...] += part

    if not needs_mask:
        # No ragged tail and no padded grid tiles: pure fast path.
        accumulate(dm, m.astype(jnp.float32), d_io, m_io.astype(jnp.float32))
    else:
        s = pl.program_id(1)
        global_tile = s * n_h + h
        edge_start = num_rows // tile_h        # first tile index needing a mask
        is_edge = global_tile >= edge_start

        @pl.when(jnp.logical_not(is_edge))
        def _full_tile():                      # full tiles: zero masking cost
            accumulate(dm, m.astype(jnp.float32),
                       d_io, m_io.astype(jnp.float32))

        @pl.when(is_edge)
        def _edge_tile():                      # ragged tail / padded OOB tiles
            rows_valid = num_rows - global_tile * tile_h   # may be <= 0 (OOB)
            rb = lax.broadcasted_iota(jnp.int32, (tile_h, 1), 0) < rows_valid
            accumulate(jnp.where(rb, dm, 0.0),
                       jnp.where(jnp.logical_and(rb, m), 1.0, 0.0),
                       jnp.where(rb, d_io, 0.0),
                       jnp.where(jnp.logical_and(rb, m_io), 1.0, 0.0))


def _vmem_plan():
    """Generation-aware (input_block_budget_bytes, vmem_limit_bytes)."""
    try:
        phys = int(pltpu.get_tpu_info().vmem_capacity_bytes)
    except Exception:
        phys = 64 * _MIB                       # conservative (v7x-sized VMEM)
    limit = min(phys // 2, 64 * _MIB)          # 64 MiB v5e/v6e, 32 MiB v7x
    budget = limit // 2                        # 2 inputs x 2 pipeline buffers
    return budget, limit


def _pick_tile_h(H, W, *, n_split, itemsize, max_tile_h, vmem_budget_bytes):
    """Largest H-chunk whose double-buffered input blocks fit the budget,
    preferring one that removes tail/OOB masking entirely."""
    rows_fit = max(8, vmem_budget_bytes // (2 * 2 * W * itemsize))
    cap = min(max_tile_h, rows_fit)
    if n_split == 1 and H <= cap:
        return H                               # one full-H tile (any H allowed)
    cap = min(cap, max(8, -(-H // n_split)))   # give every split >= 1 tile
    cap = max(8, (cap // 8) * 8)               # partial blocks: multiples of 8
    floor = max(8, (cap // 2 // 8) * 8)        # don't shrink tiles below cap/2
    for t in range(cap, floor - 1, -8):        # exact tiling AND even split
        if H % (t * n_split) == 0:
            return t
    for t in range(cap, floor - 1, -8):        # at least exact tiling of H
        if H % t == 0:
            return t
    return cap


def loss_stats(gt, pred, *, maxdisp, t_valid=1e-4, max_tile_h=1024, n_split=None):
    """Runs the Pallas kernel; returns (B, 5) per-batch statistics."""
    B, H, W = gt.shape
    if n_split is None:
        # Keep both v7x TensorCores busy when there is only one batch element.
        n_split = 2 if B == 1 else 1
    n_split = max(1, min(n_split, H // 8))

    itemsize = jnp.dtype(gt.dtype).itemsize
    budget, vmem_limit = _vmem_plan()
    tile_h = _pick_tile_h(H, W, n_split=n_split, itemsize=itemsize,
                          max_tile_h=max_tile_h, vmem_budget_bytes=budget)
    n_total = -(-H // tile_h)                  # real H tiles
    n_h = -(-n_total // n_split)               # tiles per split (padded)
    needs_mask = (H % tile_h != 0) or (n_total % n_split != 0)

    def in_map(b, s, h):
        # Clamp padded (OOB) grid tiles onto the last real block; their
        # contribution is zeroed by the row mask in the kernel.
        return (b, jnp.minimum(s * n_h + h, n_total - 1), 0)

    kernel = functools.partial(
        _loss_stats_kernel,
        maxdisp=float(maxdisp), t_valid=float(t_valid),
        num_rows=H, tile_h=tile_h, n_h=n_h, needs_mask=needs_mask)

    out = pl.pallas_call(
        kernel,
        out_shape=jax.ShapeDtypeStruct((B, n_split, 5, W), jnp.float32),
        grid_spec=pltpu.PrefetchScalarGridSpec(
            num_scalar_prefetch=0,
            grid=(B, n_split, n_h),
            in_specs=[
                pl.BlockSpec((None, tile_h, W), in_map),
                pl.BlockSpec((None, tile_h, W), in_map),
            ],
            # Output block ignores the reduction axis -> VMEM-resident
            # accumulator, written back to HBM once per (b, s).
            out_specs=pl.BlockSpec((None, None, 5, W),
                                   lambda b, s, h: (b, s, 0, 0)),
        ),
        compiler_params=pltpu.CompilerParams(
            dimension_semantics=("parallel", "parallel", "arbitrary"),
            vmem_limit_bytes=vmem_limit,
        ),
    )(gt, pred)
    # Tiny epilogue: sum over the split axis and the lane (W) axis in JAX.
    return jnp.sum(out, axis=(1, 3))


class Loss:
    """JAX/Pallas port of utils.loss.Loss (forward pass only)."""

    def __init__(self, loss_str="1.0*l1+1.0*l2+0.5*inputoutput", maxdisp=192.0):
        self.terms = []
        for term in loss_str.split("+"):
            w, ln = term.split("*")
            self.terms.append((float(w), ln))
        self.maxdisp = float(maxdisp)
        self.t_valid = 1e-4
        # TODO(synk): 'photo' (PhotometricLoss) is not constructible in the
        # reference (PhotometricLoss(args) signature bug / undefined
        # self.intrinsics_), and 'smooth' is never dispatched in Loss.forward;
        # neither is implemented here.

    def __call__(self, GT, pred, imgL, imgR, K):
        stats = loss_stats(GT, pred, maxdisp=self.maxdisp, t_valid=self.t_valid)
        d1, d2, nv = stats[:, 0], stats[:, 1], stats[:, 2]
        dio, nio = stats[:, 3], stats[:, 4]
        loss = jnp.float32(0.0)
        for w, ln in self.terms:
            if ln == "l1":
                loss = loss + w * jnp.sum(d1 / (nv + 1e-8))
            elif ln == "l2":
                loss = loss + w * jnp.sum(d2 / (nv + 1e-8))
            elif ln == "inputoutput":
                loss = loss + w * (jnp.sum(dio) / jnp.sum(nio))
        return loss


def _reference_stats(GT, pred, *, maxdisp, t_valid):
    gt_c = jnp.clip(GT, 0.0, maxdisp)
    pr_c = jnp.clip(pred, 0.0, maxdisp)
    mask = (gt_c > t_valid).astype(jnp.float32)
    d = pr_c - gt_c
    d1 = jnp.sum(jnp.abs(d) * mask, axis=(1, 2))
    d2 = jnp.sum(d * d * mask, axis=(1, 2))
    nv = jnp.sum(mask, axis=(1, 2))
    mask_io = (GT < maxdisp).astype(jnp.float32)
    dio = jnp.sum(jnp.abs(GT - pred) * mask_io, axis=(1, 2))
    nio = jnp.sum(mask_io, axis=(1, 2))
    return jnp.stack([d1, d2, nv, dio, nio], axis=1)


def _reference_loss(GT, pred, terms, maxdisp, t_valid):
    s = _reference_stats(GT, pred, maxdisp=maxdisp, t_valid=t_valid)
    loss = 0.0
    for w, ln in terms:
        if ln == "l1":
            loss = loss + w * jnp.sum(s[:, 0] / (s[:, 2] + 1e-8))
        elif ln == "l2":
            loss = loss + w * jnp.sum(s[:, 1] / (s[:, 2] + 1e-8))
        elif ln == "inputoutput":
            loss = loss + w * (jnp.sum(s[:, 3]) / jnp.sum(s[:, 4]))
    return loss


if __name__ == "__main__":
    key = jax.random.PRNGKey(0)
    kgt, kpred, kdrop, kimg, kgt2, kpred2, kgt3, kpred3 = jax.random.split(key, 8)

    # --- Test 1: single-tile fast path, full Loss forward -------------------
    B, H, W = 2, 16, 128
    # GT has values above maxdisp (clamp + inputoutput mask) and zeros
    # (t_valid mask); pred includes negatives (floor clamp on pred).
    GT = jax.random.uniform(kgt, (B, H, W), jnp.float32, 0.0, 250.0)
    GT = GT * (jax.random.uniform(kdrop, (B, H, W)) > 0.1).astype(jnp.float32)
    pred = jax.random.uniform(kpred, (B, H, W), jnp.float32, -20.0, 200.0)

    imgL = jax.random.uniform(kimg, (B, 3, H, W), jnp.float32, 0.0, 255.0)
    imgR = jnp.flip(imgL, axis=-1)
    K = jnp.tile(jnp.eye(3, dtype=jnp.float32)[None], (B, 1, 1))

    loss_mod = Loss("1.0*l1+1.0*l2+0.5*inputoutput", maxdisp=192.0)
    out = jax.block_until_ready(loss_mod(GT, pred, imgL, imgR, K))
    ref = _reference_loss(GT, pred, loss_mod.terms, loss_mod.maxdisp, loss_mod.t_valid)
    np.testing.assert_allclose(np.asarray(out), np.asarray(ref), rtol=1e-4, atol=1e-4)

    # --- Test 2: multi-tile accumulation + gated ragged-H tail mask ---------
    # H=44, tile_h forced to 16 -> 3 tiles, last one 12 rows (edge branch).
    H2 = 44
    GT2 = jax.random.uniform(kgt2, (B, H2, W), jnp.float32, 0.0, 250.0)
    pred2 = jax.random.uniform(kpred2, (B, H2, W), jnp.float32, 0.0, 200.0)
    stats2 = jax.block_until_ready(
        loss_stats(GT2, pred2, maxdisp=192.0, max_tile_h=16))
    ref_stats2 = _reference_stats(GT2, pred2, maxdisp=192.0, t_valid=1e-4)
    np.testing.assert_allclose(np.asarray(stats2), np.asarray(ref_stats2),
                               rtol=1e-4, atol=1e-3)

    # --- Test 3: B=1 -> automatic H-split parallel axis (+ padded OOB tile) -
    # H=40, tile_h forced small -> n_split=2, 5 real tiles over a 2x3 grid.
    H3, W3 = 40, 256
    GT3 = jax.random.uniform(kgt3, (1, H3, W3), jnp.float32, 0.0, 250.0)
    pred3 = jax.random.uniform(kpred3, (1, H3, W3), jnp.float32, 0.0, 200.0)
    stats3 = jax.block_until_ready(
        loss_stats(GT3, pred3, maxdisp=192.0, max_tile_h=16))
    ref_stats3 = _reference_stats(GT3, pred3, maxdisp=192.0, t_valid=1e-4)
    np.testing.assert_allclose(np.asarray(stats3), np.asarray(ref_stats3),
                               rtol=1e-4, atol=1e-3)

    print("KERNEL_OK")
</pallas_src>

<mosaic_0001>
module attributes {stable_mosaic.version = 11 : i64} {
  func.func @_loss_stats_kernel(%arg0: i32, %arg1: i32, %arg2: i32, %arg3: memref<1x16x128xf32, #tpu.memory_space<vmem>>, %arg4: memref<1x16x128xf32, #tpu.memory_space<vmem>>, %arg5: memref<1x1x5x128xf32, #tpu.memory_space<vmem>>) attributes {dimension_semantics = [#tpu.dimension_semantics<parallel>, #tpu.dimension_semantics<parallel>, #tpu.dimension_semantics<arbitrary>], iteration_bounds = array<i64: 2, 1, 1>, scalar_prefetch = 0 : i64, scratch_operands = 0 : i64, tpu.core_type = #tpu.core_type<tc>, window_params = [{transform_indices = @transform_0, window_bounds = array<i64: 1, 16, 128>}, {transform_indices = @transform_1, window_bounds = array<i64: 1, 16, 128>}, {transform_indices = @transform_2, window_bounds = array<i64: 1, 1, 5, 128>}]} {
    %c0_i32 = arith.constant 0 : i32
    %0 = arith.cmpi eq, %arg2, %c0_i32 : i32
    %1 = arith.extui %0 : i1 to i32
    %c0_i32_0 = arith.constant 0 : i32
    %2 = arith.cmpi ne, %1, %c0_i32_0 : i32
    scf.if %2 {
      %cst_25 = arith.constant 0.000000e+00 : f32
      %47 = vector.broadcast %cst_25 : f32 to vector<5x128xf32>
      %c0_26 = arith.constant 0 : index
      %c0_27 = arith.constant 0 : index
      %c0_28 = arith.constant 0 : index
      %c0_29 = arith.constant 0 : index
      %48 = vector.load %arg5[%c0_26, %c0_27, %c0_28, %c0_29] : memref<1x1x5x128xf32, #tpu.memory_space<vmem>>, vector<1x1x5x128xf32>
      %49 = vector.shape_cast %48 : vector<1x1x5x128xf32> to vector<5x128xf32>
      %50 = vector.shape_cast %47 : vector<5x128xf32> to vector<1x1x5x128xf32>
      tpu.vector_store %arg5[%c0_26, %c0_27, %c0_28, %c0_29], %50 {strides = array<i32>} : memref<1x1x5x128xf32, #tpu.memory_space<vmem>>, vector<1x1x5x128xf32>,
    } else {
    }
    %c0 = arith.constant 0 : index
    %c0_1 = arith.constant 0 : index
    %c0_2 = arith.constant 0 : index
    %3 = vector.load %arg3[%c0, %c0_1, %c0_2] : memref<1x16x128xf32, #tpu.memory_space<vmem>>, vector<1x16x128xf32>
    %4 = vector.shape_cast %3 : vector<1x16x128xf32> to vector<16x128xf32>
    %c0_3 = arith.constant 0 : index
    %c0_4 = arith.constant 0 : index
    %c0_5 = arith.constant 0 : index
    %5 = vector.load %arg4[%c0_3, %c0_4, %c0_5] : memref<1x16x128xf32, #tpu.memory_space<vmem>>, vector<1x16x128xf32>
    %6 = vector.shape_cast %5 : vector<1x16x128xf32> to vector<16x128xf32>
    %cst = arith.constant 9.99999974E-5 : f32
    %7 = vector.broadcast %cst : f32 to vector<16x128xf32>
    %8 = arith.cmpf ogt, %4, %7 : vector<16x128xf32>
    %cst_6 = arith.constant 1.920000e+02 : f32
    %9 = vector.broadcast %cst_6 : f32 to vector<16x128xf32>
    %10 = arith.cmpf olt, %4, %9 : vector<16x128xf32>
    %cst_7 = arith.constant 0.000000e+00 : f32
    %cst_8 = arith.constant 1.920000e+02 : f32
    %11 = vector.broadcast %cst_7 : f32 to vector<16x128xf32>
    %12 = arith.maximumf %11, %6 : vector<16x128xf32>
    %13 = vector.broadcast %cst_8 : f32 to vector<16x128xf32>
    %14 = arith.minimumf %13, %12 : vector<16x128xf32>
    %cst_9 = arith.constant 1.920000e+02 : f32
    %15 = vector.broadcast %cst_9 : f32 to vector<16x128xf32>
    %16 = arith.minimumf %4, %15 : vector<16x128xf32>
    %17 = arith.subf %14, %16 : vector<16x128xf32>
    %18 = math.absf %17 : vector<16x128xf32>
    %cst_10 = arith.constant 0.000000e+00 : f32
    %19 = vector.broadcast %cst_10 : f32 to vector<16x128xf32>
    %20 = arith.select %8, %18, %19 : vector<16x128xi1>, vector<16x128xf32>
    %21 = arith.subf %4, %6 : vector<16x128xf32>
    %22 = math.absf %21 : vector<16x128xf32>
    %cst_11 = arith.constant 0.000000e+00 : f32
    %23 = vector.broadcast %cst_11 : f32 to vector<16x128xf32>
    %24 = arith.select %10, %22, %23 : vector<16x128xi1>, vector<16x128xf32>
    %25 = arith.extui %8 : vector<16x128xi1> to vector<16x128xi32>
    %26 = arith.sitofp %25 : vector<16x128xi32> to vector<16x128xf32>
    %27 = arith.extui %10 : vector<16x128xi1> to vector<16x128xi32>
    %28 = arith.sitofp %27 : vector<16x128xi32> to vector<16x128xf32>
    %cst_12 = arith.constant dense<0.000000e+00> : vector<128xf32>
    %29 = vector.multi_reduction <add>, %20, %cst_12 [0] : vector<16x128xf32> to vector<128xf32>
    %30 = vector.shape_cast %29 : vector<128xf32> to vector<1x128xf32>
    %31 = arith.mulf %20, %20 : vector<16x128xf32>
    %cst_13 = arith.constant dense<0.000000e+00> : vector<128xf32>
    %32 = vector.multi_reduction <add>, %31, %cst_13 [0] : vector<16x128xf32> to vector<128xf32>
    %33 = vector.shape_cast %32 : vector<128xf32> to vector<1x128xf32>
    %cst_14 = arith.constant dense<0.000000e+00> : vector<128xf32>
    %34 = vector.multi_reduction <add>, %26, %cst_14 [0] : vector<16x128xf32> to vector<128xf32>
    %35 = vector.shape_cast %34 : vector<128xf32> to vector<1x128xf32>
    %cst_15 = arith.constant dense<0.000000e+00> : vector<128xf32>
    %36 = vector.multi_reduction <add>, %24, %cst_15 [0] : vector<16x128xf32> to vector<128xf32>
    %37 = vector.shape_cast %36 : vector<128xf32> to vector<1x128xf32>
    %cst_16 = arith.constant dense<0.000000e+00> : vector<128xf32>
    %38 = vector.multi_reduction <add>, %28, %cst_16 [0] : vector<16x128xf32> to vector<128xf32>
    %39 = vector.shape_cast %38 : vector<128xf32> to vector<1x128xf32>
    %40 = tpu.concatenate %30, %33, %35, %37, %39 in 0 : vector<1x128xf32>, vector<1x128xf32>, vector<1x128xf32>, vector<1x128xf32>, vector<1x128xf32> -> vector<5x128xf32>
    %c0_17 = arith.constant 0 : index
    %c0_18 = arith.constant 0 : index
    %c0_19 = arith.constant 0 : index
    %c0_20 = arith.constant 0 : index
    %41 = vector.load %arg5[%c0_17, %c0_18, %c0_19, %c0_20] : memref<1x1x5x128xf32, #tpu.memory_space<vmem>>, vector<1x1x5x128xf32>
    %42 = vector.shape_cast %41 : vector<1x1x5x128xf32> to vector<5x128xf32>
    %43 = arith.addf %42, %40 : vector<5x128xf32>
    %c0_21 = arith.constant 0 : index
    %c0_22 = arith.constant 0 : index
    %c0_23 = arith.constant 0 : index
    %c0_24 = arith.constant 0 : index
    %44 = vector.load %arg5[%c0_21, %c0_22, %c0_23, %c0_24] : memref<1x1x5x128xf32, #tpu.memory_space<vmem>>, vector<1x1x5x128xf32>
    %45 = vector.shape_cast %44 : vector<1x1x5x128xf32> to vector<5x128xf32>
    %46 = vector.shape_cast %43 : vector<5x128xf32> to vector<1x1x5x128xf32>
    tpu.vector_store %arg5[%c0_21, %c0_22, %c0_23, %c0_24], %46 {strides = array<i32>} : memref<1x1x5x128xf32, #tpu.memory_space<vmem>>, vector<1x1x5x128xf32>,
    return
  }
  func.func @transform_0(%arg0: i32, %arg1: i32, %arg2: i32) -> (i32, i32, i32) {
    %c1_i32 = arith.constant 1 : i32
    %0 = arith.muli %arg1, %c1_i32 : i32
    %1 = arith.addi %0, %arg2 : i32
    %c0_i32 = arith.constant 0 : i32
    %2 = arith.minsi %1, %c0_i32 : i32
    %c0_i32_0 = arith.constant 0 : i32
    %c0_i32_1 = arith.constant 0 : i32
    return %arg0, %2, %c0_i32_0 : i32, i32, i32
  }
  func.func @transform_1(%arg0: i32, %arg1: i32, %arg2: i32) -> (i32, i32, i32) {
    %c1_i32 = arith.constant 1 : i32
    %0 = arith.muli %arg1, %c1_i32 : i32
    %1 = arith.addi %0, %arg2 : i32
    %c0_i32 = arith.constant 0 : i32
    %2 = arith.minsi %1, %c0_i32 : i32
    %c0_i32_0 = arith.constant 0 : i32
    %c0_i32_1 = arith.constant 0 : i32
    return %arg0, %2, %c0_i32_0 : i32, i32, i32
  }
  func.func @transform_2(%arg0: i32, %arg1: i32, %arg2: i32) -> (i32, i32, i32, i32) {
    %c0_i32 = arith.constant 0 : i32
    %c0_i32_0 = arith.constant 0 : i32
    %c0_i32_1 = arith.constant 0 : i32
    return %arg0, %arg1, %c0_i32, %c0_i32_0 : i32, i32, i32, i32
  }
}

</mosaic_0001>

<llo_original>
// kernel: tpu_custom_call.1
$region0: #{tpu_custom_call.1}
  #allocation0 [shape = 'u32[]', space=smem, size = 0x4, offset = 0x4, fixed_abs, tag = 'smem constant byte address 0x4 - core index']
  #allocation1 [shape = 'u32[144,128]{1,0:T(1,128)}', space=vmem, size = 0x12000, scoped, tag = 'internal scratch']
  %s0 = inlined_call_operand.hbm [shape: f32[2,16,128], index: 0, kind: input, shape index: {}]
  %s1 = inlined_call_operand.hbm [shape: f32[2,16,128], index: 1, kind: input, shape index: {}]
  %s2 = inlined_call_operand.vmem [shape: f32[2,1,5,128], index: 2, kind: output, shape index: {}]
  %s3 = sld [smem:[#allocation0]]
  $region53: #{tpu_custom_call.1} parent=0
    _
  %s5 = ssub.s32 1, %s3
  %s6 = scalar_select 0, %s5, %s3
  $region1: #{tpu_custom_call.1} parent=0
    #allocation2 [shape = 'u8[16384]{0}', space=vmem, size = 0x4000, scoped, tag = 'input window, operand 0']
    #allocation3 [shape = 's32[2]{0}', space=sflag, size = 0x8, scoped, tag = 'scoped memory for tpu_custom_call.1']
    #allocation4 [shape = 'u8[16384]{0}', space=vmem, size = 0x4000, scoped, tag = 'input window, operand 1']
    #allocation5 [shape = 's32[2]{0}', space=sflag, size = 0x8, scoped, tag = 'scoped memory for tpu_custom_call.1']
    %7 = vsyncpa [#allocation3], 0
    %s8 = scalar_lea.sflag [#allocation3], 1
    %9 = vsyncpa %s8, 0
    %10 = vsyncpa [#allocation5], 0
    %s11 = scalar_lea.sflag [#allocation5], 1
    %12 = vsyncpa %s11, 0
    loop: start=0, step=1, limit=4
    $region2: #{tpu_custom_call.1} parent=1 // loop_pre_header
      _
    $region3: #{tpu_custom_call.1} parent=1 // loop_header
      %s14 = sphi 0, %s18
      %p15 = scmp.ge.s32.totalorder %s14, 4
      %s21 = sphi 0, %s40
      %s22 = sphi 0, %s36
      %s23 = sphi 0, %s32
      %s24 = sphi 0, %s21
      %s25 = sphi 0, %s22
      %s26 = sphi 0, %s23
      %s27 = sphi 0, %s24
      %s28 = sphi 0, %s25
      %s29 = sphi 0, %s26
      %s51 = sphi 0, %s53
      %s54 = sphi 0, %s51
      %s55 = sphi 0, %s54
      %s71 = sphi 0, %s55
      %s85 = sphi 0, %s87
      %s88 = sphi 0, %s85
      %s89 = sphi 0, %s88
      %s105 = sphi 0, %s89
      %s113 = sphi 0, %s115
      %s116 = sphi 0, %s113
      %s117 = sphi 0, %s116
      %s133 = sphi 0, %s117
    $region4: #{tpu_custom_call.1} parent=1 // loop_header_branch
      %17 = sbr.rel (%p15) target = $region8
    $region5: #{tpu_custom_call.1} parent=1 // loop_body
      %s19 = ssub.s32 %s14, 1
      %s20 = ssub.s32 %s14, 2
      %s30 = sadd.s32 1, %s23
      %p31 = scmp.ge.s32.totalorder %s30, 1
      %s32 = scalar_select %p31, 0, %s30
      %s33 = sadd.s32 1, %s22
      %s34 = scalar_select %p31, %s33, %s22
      %p35 = scmp.ge.s32.totalorder %s34, 1
      %s36 = scalar_select %p35, 0, %s34
      %s37 = sadd.s32 1, %s21
      %s38 = scalar_select %p35, %s37, %s21
      %p39 = scmp.ge.s32.totalorder %s38, 2
      %s40 = scalar_select %p39, 0, %s38
      %s41 = sadd.s32 %s22, %s23
      %p42 = scmp.lt.s32.totalorder %s41, 0
      %s43 = scalar_select %p42, %s41, 0
      %s44 = sadd.s32 %s36, %s32
      %p45 = scmp.lt.s32.totalorder %s44, 0
      %s46 = scalar_select %p45, %s44, 0
      %s47 = ssub.s32 %s21, %s40
      %s48 = ssub.s32 %s43, %s46
      %s49 = sor.u32 %s47, %s48
      %p50 = scmp.eq.s32.totalorder %s49, 0
      %s52 = sadd.s32 %s51, 1
      %s53 = scalar_select %p50, %s51, %s52
      %p56 = pneg %p50
      %p57 = scmp.eq.s32.totalorder %s14, 1
      %p58 = por %p56, %p57
      %p59 = scmp.ne.s32.totalorder %s51, %s54
      %p60 = scmp.eq.s32.totalorder %s14, 0
      %p61 = por %p59, %p60
      %p62 = scmp.ne.s32.totalorder %s51, %s54
      %p63 = scmp.eq.s32.totalorder %s19, 1
      %p64 = por %p62, %p63
      %p65 = scmp.ne.s32.totalorder %s54, %s55
      %p66 = scmp.eq.s32.totalorder %s19, 0
      %p67 = por %p65, %p66
      %p68 = scmp.ne.s32.totalorder %s54, %s55
      %p69 = scmp.eq.s32.totalorder %s20, 1
      %p70 = por %p68, %p69
      %p72 = scmp.ne.s32.totalorder %s55, %s71
      %p73 = scmp.eq.s32.totalorder %s20, 0
      %p74 = por %p72, %p73
      %s75 = sadd.s32 %s22, %s23
      %p76 = scmp.lt.s32.totalorder %s75, 0
      %s77 = scalar_select %p76, %s75, 0
      %s78 = sadd.s32 %s36, %s32
      %p79 = scmp.lt.s32.totalorder %s78, 0
      %s80 = scalar_select %p79, %s78, 0
      %s81 = ssub.s32 %s21, %s40
      %s82 = ssub.s32 %s77, %s80
      %s83 = sor.u32 %s81, %s82
      %p84 = scmp.eq.s32.totalorder %s83, 0
      %s86 = sadd.s32 %s85, 1
      %s87 = scalar_select %p84, %s85, %s86
      %p90 = pneg %p84
      %p91 = scmp.eq.s32.totalorder %s14, 1
      %p92 = por %p90, %p91
      %p93 = scmp.ne.s32.totalorder %s85, %s88
      %p94 = scmp.eq.s32.totalorder %s14, 0
      %p95 = por %p93, %p94
      %p96 = scmp.ne.s32.totalorder %s85, %s88
      %p97 = scmp.eq.s32.totalorder %s19, 1
      %p98 = por %p96, %p97
      %p99 = scmp.ne.s32.totalorder %s88, %s89
      %p100 = scmp.eq.s32.totalorder %s19, 0
      %p101 = por %p99, %p100
      %p102 = scmp.ne.s32.totalorder %s88, %s89
      %p103 = scmp.eq.s32.totalorder %s20, 1
      %p104 = por %p102, %p103
      %p106 = scmp.ne.s32.totalorder %s89, %s105
      %p107 = scmp.eq.s32.totalorder %s20, 0
      %p108 = por %p106, %p107
      %s109 = ssub.s32 %s21, %s40
      %s110 = ssub.s32 %s22, %s36
      %s111 = sor.u32 %s109, %s110
      %p112 = scmp.eq.s32.totalorder %s111, 0
      %s114 = sadd.s32 %s113, 1
      %s115 = scalar_select %p112, %s113, %s114
      %p118 = pneg %p112
      %p119 = scmp.eq.s32.totalorder %s14, 1
      %p120 = por %p118, %p119
      %p121 = scmp.ne.s32.totalorder %s113, %s116
      %p122 = scmp.eq.s32.totalorder %s14, 0
      %p123 = por %p121, %p122
      %p124 = scmp.ne.s32.totalorder %s113, %s116
      %p125 = scmp.eq.s32.totalorder %s19, 1
      %p126 = por %p124, %p125
      %p127 = scmp.ne.s32.totalorder %s116, %s117
      %p128 = scmp.eq.s32.totalorder %s19, 0
      %p129 = por %p127, %p128
      %p130 = scmp.ne.s32.totalorder %s116, %s117
      %p131 = scmp.eq.s32.totalorder %s20, 1
      %p132 = por %p130, %p131
      %p134 = scmp.ne.s32.totalorder %s117, %s133
      %p135 = scmp.eq.s32.totalorder %s20, 0
      %p136 = por %p134, %p135
      %p137 = scmp.le.s32.totalorder 1, %s14
      %p138 = scmp.lt.s32.totalorder %s14, 3
      %p139 = pnand %p137, %p138
      %p140 = pneg %p139
      // Predicated region
      $region9: #{tpu_custom_call.1} parent=5 // pred_check
        _
      $region10: #{tpu_custom_call.1} parent=5 // pred_check_branch
        %142 = sbr.rel (%p139) target = $region12
      $region11: #{tpu_custom_call.1} parent=5 // pred_region
        %s143 = ssub.s32 %s14, 1
      $region12: #{tpu_custom_call.1} parent=5 // pred_fallthru
        _
      %p144 = scmp.lt.s32.totalorder %s14, 2
      // Predicated region
      $region13: #{tpu_custom_call.1} parent=5 // pred_check
        %p145 = pneg %p144
      $region14: #{tpu_custom_call.1} parent=5 // pred_check_branch
        %147 = sbr.rel (%p145) target = $region16
      $region15: #{tpu_custom_call.1} parent=5 // pred_region
        // Predicated region
        $region17: #{tpu_custom_call.1} parent=15 // pred_check
          %p148 = pneg %p61
        $region18: #{tpu_custom_call.1} parent=15 // pred_check_branch
          %150 = sbr.rel (%p148) target = $region20
        $region19: #{tpu_custom_call.1} parent=15 // pred_region
          %s151 = sand.u32 %s51, 1
          %s152 = scalar_lea.sflag [#allocation3], %s151
          %s153 = sand.u32 %s51, 1
          %s154 = smul.addr %s153, 16
          %s155 = scalar_lea.vmem [#allocation2], %s154
          %s156 = sadd.s32 %s22, %s23
          %p157 = scmp.lt.s32.totalorder %s156, 0
          %s158 = scalar_select %p157, %s156, 0
          %s159 = smul.u32 2, %s158
          %s161 = ssub.s32 256, 256
          %162 = vsyncadd %s152, %s161
          %s163 = smul.addr %s21, 2
          %s164 = sadd.s32 %s159, %s163
          %s165 = smul.addr %s164, 128
          %s166 = scalar_lea.hbm %s0, %s165
          %s167 = sshll.u32 %s155, 4
          %s168 = int_to_ptr.vmem [resolvable:$true] %s167
          %173 = dma.hbm_to_vmem [thread:$0]  %s166, 256, %s168, %s152, 128, 128, 8
        $region20: #{tpu_custom_call.1} parent=15 // pred_fallthru
          _
        // Predicated region
        $region21: #{tpu_custom_call.1} parent=15 // pred_check
          %p174 = pneg %p95
        $region22: #{tpu_custom_call.1} parent=15 // pred_check_branch
          %176 = sbr.rel (%p174) target = $region24
        $region23: #{tpu_custom_call.1} parent=15 // pred_region
          %s177 = sand.u32 %s85, 1
          %s178 = scalar_lea.sflag [#allocation5], %s177
          %s179 = sand.u32 %s85, 1
          %s180 = smul.addr %s179, 16
          %s181 = scalar_lea.vmem [#allocation4], %s180
          %s182 = sadd.s32 %s22, %s23
          %p183 = scmp.lt.s32.totalorder %s182, 0
          %s184 = scalar_select %p183, %s182, 0
          %s185 = smul.u32 2, %s184
          %s187 = ssub.s32 256, 256
          %188 = vsyncadd %s178, %s187
          %s189 = smul.addr %s21, 2
          %s190 = sadd.s32 %s185, %s189
          %s191 = smul.addr %s190, 128
          %s192 = scalar_lea.hbm %s1, %s191
          %s193 = sshll.u32 %s181, 4
          %s194 = int_to_ptr.vmem [resolvable:$true] %s193
          %199 = dma.hbm_to_vmem [thread:$0]  %s192, 256, %s194, %s178, 128, 128, 8
        $region24: #{tpu_custom_call.1} parent=15 // pred_fallthru
          _
      $region16: #{tpu_custom_call.1} parent=5 // pred_fallthru
        _
      %p200 = scmp.le.s32.totalorder 1, %s14
      %p201 = scmp.lt.s32.totalorder %s14, 3
      %p202 = pnand %p200, %p201
      %p203 = pneg %p202
      // Predicated region
      $region25: #{tpu_custom_call.1} parent=5 // pred_check
        _
      $region26: #{tpu_custom_call.1} parent=5 // pred_check_branch
        %205 = sbr.rel (%p202) target = $region28
      $region27: #{tpu_custom_call.1} parent=5 // pred_region
        %s206 = ssub.s32 %s14, 1
        %s207 = sand.u32 %s54, 1
        %s208 = scalar_lea.sflag [#allocation3], %s207
        %s209 = sand.u32 %s54, 1
        %s210 = smul.addr %s209, 16
        %s211 = scalar_lea.vmem [#allocation2], %s210
        // Predicated region
        $region29: #{tpu_custom_call.1} parent=27 // pred_check
          %p212 = pneg %p67
        $region30: #{tpu_custom_call.1} parent=27 // pred_check_branch
          %214 = sbr.rel (%p212) target = $region32
        $region31: #{tpu_custom_call.1} parent=27 // pred_region
          %215 = dma.done %s208, 256
        $region32: #{tpu_custom_call.1} parent=27 // pred_fallthru
          _
        %s216 = sand.u32 %s88, 1
        %s217 = scalar_lea.sflag [#allocation5], %s216
        %s218 = sand.u32 %s88, 1
        %s219 = smul.addr %s218, 16
        %s220 = scalar_lea.vmem [#allocation4], %s219
        // Predicated region
        $region33: #{tpu_custom_call.1} parent=27 // pred_check
          %p221 = pneg %p101
        $region34: #{tpu_custom_call.1} parent=27 // pred_check_branch
          %223 = sbr.rel (%p221) target = $region36
        $region35: #{tpu_custom_call.1} parent=27 // pred_region
          %224 = dma.done %s217, 256
        $region36: #{tpu_custom_call.1} parent=27 // pred_fallthru
          _
        %s225 = sand.u32 %s54, 1
        %s226 = scalar_lea.sflag [#allocation3], %s225
        %s227 = sand.u32 %s54, 1
        %s228 = smul.addr %s227, 16
        %s229 = scalar_lea.vmem [#allocation2], %s228
        %p230 = pneg %p67
        %p231 = pneg %p64
        %s232 = sand.u32 %s88, 1
        %s233 = scalar_lea.sflag [#allocation5], %s232
        %s234 = sand.u32 %s88, 1
        %s235 = smul.addr %s234, 16
        %s236 = scalar_lea.vmem [#allocation4], %s235
        %p237 = pneg %p101
        %p238 = pneg %p98
        %p239 = pneg %p129
        %p240 = pneg %p126
        %p241 = scmp.lt.s32.totalorder %s24, 1
        %s242 = scalar_select %p241, %s24, 1
        %p243 = scmp.lt.s32.totalorder %s25, 0
        %s244 = scalar_select %p243, %s25, 0
        %s245 = sadd.s32 %s244, %s242
        %s246 = smul.addr %s245, 8
        %s247 = scalar_lea.vmem %s2, %s246
        %s248 = sadd.s32 %s25, %s26
        %p249 = scmp.lt.s32.totalorder %s248, 0
        %s250 = scalar_select %p249, %s248, 0
        %s251 = smul.u32 2, %s250
        %s252 = sadd.s32 %s25, %s26
        %p253 = scmp.lt.s32.totalorder %s252, 0
        %s254 = scalar_select %p253, %s252, 0
        %s255 = smul.u32 2, %s254
        %p256 = scmp.lt.s32.totalorder %s24, 1
        %s257 = scalar_select %p256, %s24, 1
        %p258 = scmp.lt.s32.totalorder %s25, 0
        %s259 = scalar_select %p258, %s25, 0
        %s260 = sadd.s32 %s259, %s257
        %s261 = smul.addr %s260, 8
        %s262 = scalar_lea.vmem %s2, %s261
        %p263 = scmp.eq.s32.totalorder %s26, 0
        // Predicated region
        $region37: #{tpu_custom_call.1} parent=27 // pred_check
          %p264 = pneg %p263
        $region38: #{tpu_custom_call.1} parent=27 // pred_check_branch
          %266 = sbr.rel (%p264) target = $region40
        $region39: #{tpu_custom_call.1} parent=27 // pred_region
          %267 = vst [vmem:[%s262] sm:$0x1f] 0.0
        $region40: #{tpu_custom_call.1} parent=27 // pred_fallthru
          _
        %v268 = vld [vmem:[%s211] sm:$0xff]
        %v269 = vld [vmem:[%s211 + $0x8] sm:$0xff]
        %v270 = vld [vmem:[%s220] sm:$0xff]
        %v271 = vld [vmem:[%s220 + $0x8] sm:$0xff]
        %vm272 = vcmp.gt.f32.partialorder %v268, 0.0001
        %vm273 = vcmp.gt.f32.partialorder %v269, 0.0001
        %vm274 = vcmp.lt.f32.partialorder %v268, 192.0
        %vm275 = vcmp.lt.f32.partialorder %v269, 192.0
        %v276 = vmax.f32 %v270, 0.0
        %v277 = vmax.f32 %v271, 0.0
        %v278 = vmin.f32 %v276, 192.0
        %v279 = vmin.f32 %v277, 192.0
        %v280 = vmin.f32 %v268, 192.0
        %v281 = vmin.f32 %v269, 192.0
        %v282 = vsub.f32 %v278, %v280
        %v283 = vsub.f32 %v279, %v281
        %v284 = vand.u32 2147483647, %v282
        %v285 = vand.u32 2147483647, %v283
        %v286 = vsel %vm272, %v284, 0.0
        %v287 = vsel %vm273, %v285, 0.0
        %v288 = vsub.f32 %v268, %v270
        %v289 = vsub.f32 %v269, %v271
        %v290 = vand.u32 2147483647, %v288
        %v291 = vand.u32 2147483647, %v289
        %v292 = vsel %vm274, %v290, 0.0
        %v293 = vsel %vm275, %v291, 0.0
        %v294 = vsel %vm272, 1, 0
        %v295 = vsel %vm273, 1, 0
        %v296 = vcvt.s32.f32 %v294
        %v297 = vcvt.s32.f32 %v295
        %v298 = vsel %vm274, 1, 0
        %v299 = vsel %vm275, 1, 0
        %v300 = vcvt.s32.f32 %v298
        %v301 = vcvt.s32.f32 %v299
        %v302 = vadd.f32 %v286, %v287
        %v303 = vrot.slane %v302, 4
        %v304 = vadd.f32 %v302, %v303
        %v305 = vrot.slane %v304, 2
        %v306 = vadd.f32 %v304, %v305
        %v307 = vrot.slane %v306, 1
        %v308 = vadd.f32 %v306, %v307
        %v309 = vmul.f32 %v286, %v286
        %v310 = vmul.f32 %v287, %v287
        %v311 = vadd.f32 %v309, %v310
        %v312 = vrot.slane %v311, 4
        %v313 = vadd.f32 %v311, %v312
        %v314 = vrot.slane %v313, 2
        %v315 = vadd.f32 %v313, %v314
        %v316 = vrot.slane %v315, 1
        %v317 = vadd.f32 %v315, %v316
        %v318 = vadd.f32 %v296, %v297
        %v319 = vrot.slane %v318, 4
        %v320 = vadd.f32 %v318, %v319
        %v321 = vrot.slane %v320, 2
        %v322 = vadd.f32 %v320, %v321
        %v323 = vrot.slane %v322, 1
        %v324 = vadd.f32 %v322, %v323
        %v325 = vadd.f32 %v292, %v293
        %v326 = vrot.slane %v325, 4
        %v327 = vadd.f32 %v325, %v326
        %v328 = vrot.slane %v327, 2
        %v329 = vadd.f32 %v327, %v328
        %v330 = vrot.slane %v329, 1
        %v331 = vadd.f32 %v329, %v330
        %v332 = vadd.f32 %v300, %v301
        %v333 = vrot.slane %v332, 4
        %v334 = vadd.f32 %v332, %v333
        %v335 = vrot.slane %v334, 2
        %v336 = vadd.f32 %v334, %v335
        %v337 = vrot.slane %v336, 1
        %v338 = vadd.f32 %v336, %v337
        %vm339 = vcmask 1040384
        %v340 = vsel %vm339, %v308, %v317
        %vm341 = vcmask 1041408
        %v342 = vsel %vm341, %v340, %v324
        %vm343 = vcmask 1042432
        %v344 = vsel %vm343, %v342, %v331
        %vm345 = vcmask 1043456
        %v346 = vsel %vm345, %v344, %v338
        %v347 = vld [vmem:[%s262] sm:$0x1f]
        %v348 = vadd.f32 %v347, %v346
        %349 = vst [vmem:[%s262] sm:$0x1f] %v348
        %p350 = scmp.lt.s32.totalorder %s24, 1
        %s351 = scalar_select %p350, %s24, 1
        %p352 = scmp.lt.s32.totalorder %s25, 0
        %s353 = scalar_select %p352, %s25, 0
        %s354 = sadd.s32 %s353, %s351
        %s355 = smul.addr %s354, 8
        %s356 = scalar_lea.vmem %s2, %s355
        // Predicated region
        $region41: #{tpu_custom_call.1} parent=27 // pred_check
          %p357 = pneg %p126
        $region42: #{tpu_custom_call.1} parent=27 // pred_check_branch
          %359 = sbr.rel (%p357) target = $region44
        $region43: #{tpu_custom_call.1} parent=27 // pred_region
          _
        $region44: #{tpu_custom_call.1} parent=27 // pred_fallthru
          _
      $region28: #{tpu_custom_call.1} parent=5 // pred_fallthru
        _
      %p360 = scmp.le.s32.totalorder 2, %s14
      // Predicated region
      $region45: #{tpu_custom_call.1} parent=5 // pred_check
        %p361 = pneg %p360
      $region46: #{tpu_custom_call.1} parent=5 // pred_check_branch
        %363 = sbr.rel (%p361) target = $region48
      $region47: #{tpu_custom_call.1} parent=5 // pred_region
        %s364 = ssub.s32 %s14, 2
        // Predicated region
        $region49: #{tpu_custom_call.1} parent=47 // pred_check
          %p365 = pneg %p132
        $region50: #{tpu_custom_call.1} parent=47 // pred_check_branch
          %367 = sbr.rel (%p365) target = $region52
        $region51: #{tpu_custom_call.1} parent=47 // pred_region
          %p368 = scmp.lt.s32.totalorder %s27, 1
          %s369 = scalar_select %p368, %s27, 1
          %p370 = scmp.lt.s32.totalorder %s28, 0
          %s371 = scalar_select %p370, %s28, 0
          %s372 = sadd.s32 %s371, %s369
          %s373 = smul.addr %s372, 8
          %s374 = scalar_lea.vmem %s2, %s373
        $region52: #{tpu_custom_call.1} parent=47 // pred_fallthru
          _
      $region48: #{tpu_custom_call.1} parent=5 // pred_fallthru
        _
    $region6: #{tpu_custom_call.1} parent=1 // loop_footer
      %s18 = sadd.s32 1, %s14
    $region7: #{tpu_custom_call.1} parent=1 // loop_footer_branch
      %13 = sbr.rel target = $region3
    $region8: #{tpu_custom_call.1} parent=1 // loop_exit
      _
    %375 = vsyncpa [#allocation3], 1
    %s376 = scalar_lea.sflag [#allocation3], 1
    %377 = vsyncpa %s376, 1
    %378 = vsyncpa [#allocation5], 1
    %s379 = scalar_lea.sflag [#allocation5], 1
    %380 = vsyncpa %s379, 1

</llo_original>
